<compile_context>
chip_gen: v5e
topology: v5e:2x2
jax: 0.10.0
libtpu: 0.0.40
codegen_flags: <defaults>
</compile_context>

<pallas_src>
import functools

import jax
import jax.numpy as jnp
from jax.experimental import pallas as pl
from jax.experimental.pallas import tpu as pltpu


def _round_up(x, m):
    return ((x + m - 1) // m) * m


def qnet_kernel(ut_ref, w1_ref, b1_ref, w2_ref, b2_ref, w3_ref, b3_ref,
                out_ref, *, L, mu, d):
    """Batch-on-lanes layout.

    ut_ref : (dim_in, TILE_B)   matmul dtype (bf16 by default)
    w*_ref : (fan_out, fan_in)  matmul dtype, VMEM-resident across the grid
    b*_ref : (fan_out, 1)       f32
    out_ref: (d, TILE_B)        f32
    """
    mm_dtype = ut_ref.dtype

    # Layer 1: Linear + ReLU.  (h1, dim_in) @ (dim_in, TILE_B) -> (h1, TILE_B)
    h = jnp.dot(w1_ref[...], ut_ref[...], preferred_element_type=jnp.float32)
    h = jnp.maximum(h + b1_ref[...], 0.0)

    # Layer 2: Linear + ReLU.
    h = jnp.dot(w2_ref[...], h.astype(mm_dtype),
                preferred_element_type=jnp.float32)
    h = jnp.maximum(h + b2_ref[...], 0.0)

    # Output layer: Linear (no activation).
    z = jnp.dot(w3_ref[...], h.astype(mm_dtype),
                preferred_element_type=jnp.float32) + b3_ref[...]

    # Numerically stable softmax over the feature (sublane) axis, all f32.
    m = jnp.max(z, axis=0, keepdims=True)
    p = jnp.exp(z - m)
    denom = jnp.sum(p, axis=0, keepdims=True)
    e = (p / denom) * (L - mu) + mu          # exact reciprocal (no approx)

    # Epilogue: lane-dense row stores into the transposed output block.
    #   row 0      -> L
    #   rows 1..d-2-> e
    #   row d-1    -> mu
    tb = out_ref.shape[1]
    out_ref[0:1, :] = jnp.full((1, tb), L, dtype=out_ref.dtype)
    out_ref[1:d - 1, :] = e.astype(out_ref.dtype)
    out_ref[d - 1:d, :] = jnp.full((1, tb), mu, dtype=out_ref.dtype)


def qnet_forward(u, params, *, L, mu, tile_b=None, matmul_dtype=jnp.bfloat16):
    """u: (B, dim_in) float32.  params: dict of W1,b1,W2,b2,W3,b3 (float32).

    Returns (B, d) float32 eigens = [L, softmax(MLP(u))*(L-mu)+mu, mu]."""
    B, dim_in = u.shape
    d = params["W3"].shape[1] + 2

    if tile_b is None:
        # Large tiles amortize the ~0.35 us fixed per-grid-step overhead, but
        # keep >= 2 tiles so v7x's two TensorCores both get work (the batch
        # axis is "parallel").  Multiples of 256 keep lanes / MXU N aligned.
        max_tile = 32768
        b_ceil = _round_up(B, 256)
        if b_ceil <= 256:
            tile_b = 256
        else:
            want_tiles = max(2, -(-b_ceil // max_tile))
            tile_b = _round_up(-(-B // want_tiles), 256)

    b_pad = _round_up(B, tile_b)
    n_tiles = b_pad // tile_b

    # Batch-on-lanes layout: stream u^T (dim_in, b_pad).  Padded rows compute
    # harmless finite values (bias-only softmax) and are sliced off below.
    u_pad = u if b_pad == B else jnp.pad(u, ((0, b_pad - B), (0, 0)))
    u_t = u_pad.T.astype(matmul_dtype)

    # Transposed weights (fan_out, fan_in) in the matmul dtype; biases stay
    # f32 as (fan_out, 1) columns (added after f32 accumulation).
    w1t = params["W1"].T.astype(matmul_dtype)
    w2t = params["W2"].T.astype(matmul_dtype)
    w3t = params["W3"].T.astype(matmul_dtype)
    b1t = params["b1"].reshape(-1, 1).astype(jnp.float32)
    b2t = params["b2"].reshape(-1, 1).astype(jnp.float32)
    b3t = params["b3"].reshape(-1, 1).astype(jnp.float32)

    # Whole-array blocks with a constant index_map -> loaded once, stay
    # VMEM-resident across all batch tiles.
    resident = lambda a: pl.BlockSpec(a.shape, lambda i: (0, 0))

    kernel = functools.partial(qnet_kernel, L=float(L), mu=float(mu), d=d)

    out_t = pl.pallas_call(
        kernel,
        out_shape=jax.ShapeDtypeStruct((d, b_pad), jnp.float32),
        grid_spec=pltpu.PrefetchScalarGridSpec(
            num_scalar_prefetch=0,
            grid=(n_tiles,),
            in_specs=[
                pl.BlockSpec((dim_in, tile_b), lambda i: (0, i)),  # u^T tile
                resident(w1t), resident(b1t),
                resident(w2t), resident(b2t),
                resident(w3t), resident(b3t),
            ],
            out_specs=pl.BlockSpec((d, tile_b), lambda i: (0, i)),
        ),
        compiler_params=pltpu.CompilerParams(
            # Independent batch tiles -> shard across TensorCores (v7x).
            dimension_semantics=("parallel",),
            # Covers double-buffered (dim_in+d, 32768) tiles plus the
            # (32, tile_b) intermediates with headroom on v7x (64 MiB phys).
            vmem_limit_bytes=48 * 1024 * 1024,
        ),
    )(u_t, w1t, b1t, w2t, b2t, w3t, b3t)

    # (d, b_pad) -> (B, d): layout plumbing outside the kernel.
    return out_t.T[:B]


def qnet_reference(u, params, *, L, mu, matmul_dtype=jnp.bfloat16):
    """Plain-JAX reference with the same bf16-in / f32-accumulate numerics."""
    mm = matmul_dtype
    h = jnp.dot(u.astype(mm), params["W1"].astype(mm),
                preferred_element_type=jnp.float32) + params["b1"]
    h = jnp.maximum(h, 0.0)
    h = jnp.dot(h.astype(mm), params["W2"].astype(mm),
                preferred_element_type=jnp.float32) + params["b2"]
    h = jnp.maximum(h, 0.0)
    z = jnp.dot(h.astype(mm), params["W3"].astype(mm),
                preferred_element_type=jnp.float32) + params["b3"]
    e = jax.nn.softmax(z, axis=-1) * (L - mu) + mu
    B = u.shape[0]
    return jnp.concatenate(
        [jnp.full((B, 1), L, jnp.float32), e,
         jnp.full((B, 1), mu, jnp.float32)], axis=-1)


def init_params(key, dim_in, hidden_dims, d):
    """Deterministic init: normal(0, 1/sqrt(fan_in)) weights, zero biases
    (matches bias_init='zero' in weights_init)."""
    dims = [dim_in] + list(hidden_dims) + [d - 2]
    params = {}
    keys = jax.random.split(key, len(dims) - 1)
    for i, (fi, fo) in enumerate(zip(dims[:-1], dims[1:]), start=1):
        w = jax.random.normal(keys[i - 1], (fi, fo), dtype=jnp.float32) / jnp.sqrt(fi)
        b = jnp.zeros((1, fo), dtype=jnp.float32)
        params[f"W{i}"] = w
        params[f"b{i}"] = b
    return params


if __name__ == "__main__":
    # Small shapes consistent with the module:
    #   args.dim_in = 16, hidden_dims_eigs = "32-32", args.d = 10,
    #   args.mu = 0.1, args.L = 10.0, batch = 4
    batch, dim_in, d = 4, 16, 10
    hidden_dims = (32, 32)
    mu, L = 0.1, 10.0

    key = jax.random.PRNGKey(0)
    k_u, k_p = jax.random.split(key)
    u = jax.random.normal(k_u, (batch, dim_in), dtype=jnp.float32)
    params = init_params(k_p, dim_in, hidden_dims, d)

    out = qnet_forward(u, params, L=L, mu=mu)
    out = jax.block_until_ready(out)

    ref = qnet_reference(u, params, L=L, mu=mu)
    assert out.shape == (batch, d), out.shape
    # Exact softmax reciprocal + identical bf16-in/f32-accumulate math in the
    # reference -> only matmul summation-order noise remains.
    assert jnp.allclose(out, ref, atol=1e-3, rtol=1e-3), (out, ref)

    print("KERNEL_OK")
</pallas_src>

<mosaic_0001>
module attributes {stable_mosaic.version = 11 : i64} {
  func.func @qnet_kernel(%arg0: i32, %arg1: memref<16x256xbf16, #tpu.memory_space<vmem>>, %arg2: memref<32x16xbf16, #tpu.memory_space<vmem>>, %arg3: memref<32x1xf32, #tpu.memory_space<vmem>>, %arg4: memref<32x32xbf16, #tpu.memory_space<vmem>>, %arg5: memref<32x1xf32, #tpu.memory_space<vmem>>, %arg6: memref<8x32xbf16, #tpu.memory_space<vmem>>, %arg7: memref<8x1xf32, #tpu.memory_space<vmem>>, %arg8: memref<10x256xf32, #tpu.memory_space<vmem>>) attributes {dimension_semantics = [#tpu.dimension_semantics<parallel>], iteration_bounds = array<i64: 1>, scalar_prefetch = 0 : i64, scratch_operands = 0 : i64, tpu.core_type = #tpu.core_type<tc>, window_params = [{transform_indices = @transform_0, window_bounds = array<i64: 16, 256>}, {pipeline_mode = #tpu.pipeline_mode<synchronous>, transform_indices = @transform_1, window_bounds = array<i64: 32, 16>}, {pipeline_mode = #tpu.pipeline_mode<synchronous>, transform_indices = @transform_2, window_bounds = array<i64: 32, 1>}, {pipeline_mode = #tpu.pipeline_mode<synchronous>, transform_indices = @transform_3, window_bounds = array<i64: 32, 32>}, {pipeline_mode = #tpu.pipeline_mode<synchronous>, transform_indices = @transform_4, window_bounds = array<i64: 32, 1>}, {pipeline_mode = #tpu.pipeline_mode<synchronous>, transform_indices = @transform_5, window_bounds = array<i64: 8, 32>}, {pipeline_mode = #tpu.pipeline_mode<synchronous>, transform_indices = @transform_6, window_bounds = array<i64: 8, 1>}, {transform_indices = @transform_7, window_bounds = array<i64: 10, 256>}]} {
    %c0 = arith.constant 0 : index
    %c0_0 = arith.constant 0 : index
    %0 = vector.load %arg2[%c0, %c0_0] : memref<32x16xbf16, #tpu.memory_space<vmem>>, vector<32x16xbf16>
    %c0_1 = arith.constant 0 : index
    %c0_2 = arith.constant 0 : index
    %1 = vector.load %arg1[%c0_1, %c0_2] : memref<16x256xbf16, #tpu.memory_space<vmem>>, vector<16x256xbf16>
    %cst = arith.constant dense<0.000000e+00> : vector<32x256xf32>
    %2 = tpu.matmul %0, %1, %cst {dimension_numbers = #tpu.dot_dimension_numbers<[1], [0], [0], [1], [0, 0, 1, 1], [], []>} : vector<32x16xbf16>, vector<16x256xbf16>, vector<32x256xf32> -> vector<32x256xf32>
    %c0_3 = arith.constant 0 : index
    %c0_4 = arith.constant 0 : index
    %3 = vector.load %arg3[%c0_3, %c0_4] : memref<32x1xf32, #tpu.memory_space<vmem>>, vector<32x1xf32>
    %4 = vector.broadcast %3 : vector<32x1xf32> to vector<32x256xf32>
    %5 = arith.addf %2, %4 : vector<32x256xf32>
    %cst_5 = arith.constant 0.000000e+00 : f32
    %6 = vector.broadcast %cst_5 : f32 to vector<32x256xf32>
    %7 = arith.maximumf %5, %6 : vector<32x256xf32>
    %c0_6 = arith.constant 0 : index
    %c0_7 = arith.constant 0 : index
    %8 = vector.load %arg4[%c0_6, %c0_7] : memref<32x32xbf16, #tpu.memory_space<vmem>>, vector<32x32xbf16>
    %9 = arith.truncf %7 : vector<32x256xf32> to vector<32x256xbf16>
    %cst_8 = arith.constant dense<0.000000e+00> : vector<32x256xf32>
    %10 = tpu.matmul %8, %9, %cst_8 {dimension_numbers = #tpu.dot_dimension_numbers<[1], [0], [0], [1], [0, 0, 1, 1], [], []>} : vector<32x32xbf16>, vector<32x256xbf16>, vector<32x256xf32> -> vector<32x256xf32>
    %c0_9 = arith.constant 0 : index
    %c0_10 = arith.constant 0 : index
    %11 = vector.load %arg5[%c0_9, %c0_10] : memref<32x1xf32, #tpu.memory_space<vmem>>, vector<32x1xf32>
    %12 = vector.broadcast %11 : vector<32x1xf32> to vector<32x256xf32>
    %13 = arith.addf %10, %12 : vector<32x256xf32>
    %cst_11 = arith.constant 0.000000e+00 : f32
    %14 = vector.broadcast %cst_11 : f32 to vector<32x256xf32>
    %15 = arith.maximumf %13, %14 : vector<32x256xf32>
    %c0_12 = arith.constant 0 : index
    %c0_13 = arith.constant 0 : index
    %16 = vector.load %arg6[%c0_12, %c0_13] : memref<8x32xbf16, #tpu.memory_space<vmem>>, vector<8x32xbf16>
    %17 = arith.truncf %15 : vector<32x256xf32> to vector<32x256xbf16>
    %cst_14 = arith.constant dense<0.000000e+00> : vector<8x256xf32>
    %18 = tpu.matmul %16, %17, %cst_14 {dimension_numbers = #tpu.dot_dimension_numbers<[1], [0], [0], [1], [0, 0, 1, 1], [], []>} : vector<8x32xbf16>, vector<32x256xbf16>, vector<8x256xf32> -> vector<8x256xf32>
    %c0_15 = arith.constant 0 : index
    %c0_16 = arith.constant 0 : index
    %19 = vector.load %arg7[%c0_15, %c0_16] : memref<8x1xf32, #tpu.memory_space<vmem>>, vector<8x1xf32>
    %20 = vector.broadcast %19 : vector<8x1xf32> to vector<8x256xf32>
    %21 = arith.addf %18, %20 : vector<8x256xf32>
    %cst_17 = arith.constant dense<0xFF800000> : vector<256xf32>
    %22 = vector.multi_reduction <maximumf>, %21, %cst_17 [0] : vector<8x256xf32> to vector<256xf32>
    %23 = vector.shape_cast %22 : vector<256xf32> to vector<1x256xf32>
    %24 = vector.broadcast %23 : vector<1x256xf32> to vector<8x256xf32>
    %25 = arith.subf %21, %24 : vector<8x256xf32>
    %26 = math.exp %25 : vector<8x256xf32>
    %cst_18 = arith.constant dense<0.000000e+00> : vector<256xf32>
    %27 = vector.multi_reduction <add>, %26, %cst_18 [0] : vector<8x256xf32> to vector<256xf32>
    %28 = vector.shape_cast %27 : vector<256xf32> to vector<1x256xf32>
    %29 = vector.broadcast %28 : vector<1x256xf32> to vector<8x256xf32>
    %30 = arith.divf %26, %29 : vector<8x256xf32>
    %cst_19 = arith.constant 9.89999961 : f32
    %31 = vector.broadcast %cst_19 : f32 to vector<8x256xf32>
    %32 = arith.mulf %30, %31 : vector<8x256xf32>
    %cst_20 = arith.constant 1.000000e-01 : f32
    %33 = vector.broadcast %cst_20 : f32 to vector<8x256xf32>
    %34 = arith.addf %32, %33 : vector<8x256xf32>
    %cst_21 = arith.constant 1.000000e+01 : f32
    %35 = vector.broadcast %cst_21 : f32 to vector<1x256xf32>
    %c0_22 = arith.constant 0 : index
    %c0_23 = arith.constant 0 : index
    %36 = vector.load %arg8[%c0_22, %c0_23] : memref<10x256xf32, #tpu.memory_space<vmem>>, vector<1x256xf32>
    tpu.vector_store %arg8[%c0_22, %c0_23], %35 {strides = array<i32>} : memref<10x256xf32, #tpu.memory_space<vmem>>, vector<1x256xf32>,
    %c1 = arith.constant 1 : index
    %c0_24 = arith.constant 0 : index
    %37 = vector.load %arg8[%c1, %c0_24] : memref<10x256xf32, #tpu.memory_space<vmem>>, vector<8x256xf32>
    tpu.vector_store %arg8[%c1, %c0_24], %34 {strides = array<i32>} : memref<10x256xf32, #tpu.memory_space<vmem>>, vector<8x256xf32>,
    %cst_25 = arith.constant 1.000000e-01 : f32
    %38 = vector.broadcast %cst_25 : f32 to vector<1x256xf32>
    %c9 = arith.constant 9 : index
    %c0_26 = arith.constant 0 : index
    %39 = vector.load %arg8[%c9, %c0_26] : memref<10x256xf32, #tpu.memory_space<vmem>>, vector<1x256xf32>
    tpu.vector_store %arg8[%c9, %c0_26], %38 {strides = array<i32>} : memref<10x256xf32, #tpu.memory_space<vmem>>, vector<1x256xf32>,
    return
  }
  func.func @transform_0(%arg0: i32) -> (i32, i32) {
    %c0_i32 = arith.constant 0 : i32
    %c0_i32_0 = arith.constant 0 : i32
    return %c0_i32, %arg0 : i32, i32
  }
  func.func @transform_1(%arg0: i32) -> (i32, i32) {
    %c0_i32 = arith.constant 0 : i32
    %c0_i32_0 = arith.constant 0 : i32
    %c0_i32_1 = arith.constant 0 : i32
    return %c0_i32, %c0_i32_0 : i32, i32
  }
  func.func @transform_2(%arg0: i32) -> (i32, i32) {
    %c0_i32 = arith.constant 0 : i32
    %c0_i32_0 = arith.constant 0 : i32
    %c0_i32_1 = arith.constant 0 : i32
    return %c0_i32, %c0_i32_0 : i32, i32
  }
  func.func @transform_3(%arg0: i32) -> (i32, i32) {
    %c0_i32 = arith.constant 0 : i32
    %c0_i32_0 = arith.constant 0 : i32
    %c0_i32_1 = arith.constant 0 : i32
    return %c0_i32, %c0_i32_0 : i32, i32
  }
  func.func @transform_4(%arg0: i32) -> (i32, i32) {
    %c0_i32 = arith.constant 0 : i32
    %c0_i32_0 = arith.constant 0 : i32
    %c0_i32_1 = arith.constant 0 : i32
    return %c0_i32, %c0_i32_0 : i32, i32
  }
  func.func @transform_5(%arg0: i32) -> (i32, i32) {
    %c0_i32 = arith.constant 0 : i32
    %c0_i32_0 = arith.constant 0 : i32
    %c0_i32_1 = arith.constant 0 : i32
    return %c0_i32, %c0_i32_0 : i32, i32
  }
  func.func @transform_6(%arg0: i32) -> (i32, i32) {
    %c0_i32 = arith.constant 0 : i32
    %c0_i32_0 = arith.constant 0 : i32
    %c0_i32_1 = arith.constant 0 : i32
    return %c0_i32, %c0_i32_0 : i32, i32
  }
  func.func @transform_7(%arg0: i32) -> (i32, i32) {
    %c0_i32 = arith.constant 0 : i32
    %c0_i32_0 = arith.constant 0 : i32
    return %c0_i32, %arg0 : i32, i32
  }
}

</mosaic_0001>

<llo_original>
// kernel: tpu_custom_call.1
$region0: #{tpu_custom_call.1}
  #allocation0 [shape = 'u32[]', space=smem, size = 0x4, offset = 0x4, fixed_abs, tag = 'smem constant byte address 0x4 - core index']
  #allocation1 [shape = 'u32[72,128]{1,0:T(1,128)}', space=vmem, size = 0x9000, scoped, tag = 'internal scratch']
  %s0 = inlined_call_operand.vmem [shape: bf16[16,256], index: 0, kind: input, shape index: {}]
  %s1 = inlined_call_operand.vmem [shape: bf16[32,16], index: 1, kind: input, shape index: {}]
  %s2 = inlined_call_operand.vmem [shape: f32[32,1], index: 2, kind: input, shape index: {}]
  %s3 = inlined_call_operand.vmem [shape: bf16[32,32], index: 3, kind: input, shape index: {}]
  %s4 = inlined_call_operand.vmem [shape: f32[32,1], index: 4, kind: input, shape index: {}]
  %s5 = inlined_call_operand.vmem [shape: bf16[8,32], index: 5, kind: input, shape index: {}]
  %s6 = inlined_call_operand.vmem [shape: f32[8,1], index: 6, kind: input, shape index: {}]
  %s7 = inlined_call_operand.hbm [shape: f32[10,256], index: 7, kind: output, shape index: {}]
  %s8 = sld [smem:[#allocation0]]
  $region38: #{tpu_custom_call.1} parent=0
    _
  %s10 = ssub.s32 1, %s8
  %s11 = scalar_select 0, %s10, %s8
  $region1: #{tpu_custom_call.1} parent=0
    #allocation2 [shape = 'u8[16384]{0}', space=vmem, size = 0x4000, scoped, tag = 'output window, operand 0, single buffered']
    #allocation3 [shape = 's32[1]{0}', space=sflag, size = 0x4, scoped, tag = 'scoped memory for tpu_custom_call.1']
    %12 = vsyncpa [#allocation3], 0
    // Predicated region
    $region2: #{tpu_custom_call.1} parent=1 // pred_check
      _
    $region3: #{tpu_custom_call.1} parent=1 // pred_check_branch
      %14 = sbr.rel (0) target = $region5
    $region4: #{tpu_custom_call.1} parent=1 // pred_region
      _
    $region5: #{tpu_custom_call.1} parent=1 // pred_fallthru
      _
    // Predicated region
    $region6: #{tpu_custom_call.1} parent=1 // pred_check
      _
    $region7: #{tpu_custom_call.1} parent=1 // pred_check_branch
      %16 = sbr.rel (0) target = $region9
    $region8: #{tpu_custom_call.1} parent=1 // pred_region
      _
    $region9: #{tpu_custom_call.1} parent=1 // pred_fallthru
      _
    // Predicated region
    $region10: #{tpu_custom_call.1} parent=1 // pred_check
      _
    $region11: #{tpu_custom_call.1} parent=1 // pred_check_branch
      %18 = sbr.rel (0) target = $region13
    $region12: #{tpu_custom_call.1} parent=1 // pred_region
      _
    $region13: #{tpu_custom_call.1} parent=1 // pred_fallthru
      _
    // Predicated region
    $region14: #{tpu_custom_call.1} parent=1 // pred_check
      _
    $region15: #{tpu_custom_call.1} parent=1 // pred_check_branch
      %20 = sbr.rel (0) target = $region17
    $region16: #{tpu_custom_call.1} parent=1 // pred_region
      _
    $region17: #{tpu_custom_call.1} parent=1 // pred_fallthru
      _
    // Predicated region
    $region18: #{tpu_custom_call.1} parent=1 // pred_check
      _
    $region19: #{tpu_custom_call.1} parent=1 // pred_check_branch
      %22 = sbr.rel (0) target = $region21
    $region20: #{tpu_custom_call.1} parent=1 // pred_region
      _
    $region21: #{tpu_custom_call.1} parent=1 // pred_fallthru
      _
    // Predicated region
    $region22: #{tpu_custom_call.1} parent=1 // pred_check
      _
    $region23: #{tpu_custom_call.1} parent=1 // pred_check_branch
      %24 = sbr.rel (0) target = $region25
    $region24: #{tpu_custom_call.1} parent=1 // pred_region
      _
    $region25: #{tpu_custom_call.1} parent=1 // pred_fallthru
      _
    // Predicated region
    $region26: #{tpu_custom_call.1} parent=1 // pred_check
      _
    $region27: #{tpu_custom_call.1} parent=1 // pred_check_branch
      %26 = sbr.rel (0) target = $region29
    $region28: #{tpu_custom_call.1} parent=1 // pred_region
      _
    $region29: #{tpu_custom_call.1} parent=1 // pred_fallthru
      _
    %v28 = vld [vmem:[%s1] sm:$0xf]
    %v29 = vld [vmem:[%s1 + $0x4] sm:$0xf]
    %v30 = vld [vmem:[%s1 + $0x8] sm:$0xf]
    %v31 = vld [vmem:[%s1 + $0xc] sm:$0xf]
    %v32 = vld [vmem:[%s0] sm:$0xff]
    %v33 = vld [vmem:[%s0 + $0x8] sm:$0xff]
    %v34 = vld [vmem:[%s2] sm:$0xff]
    %v35 = vld [vmem:[%s2 + $0x8] sm:$0xff]
    %v36 = vld [vmem:[%s2 + $0x10] sm:$0xff]
    %v37 = vld [vmem:[%s2 + $0x18] sm:$0xff]
    %39 = vset.pattern.permute.xlu0 0
    %40 = vperm.xlu0 %39, %v34
    %v41 = vpop.permute.xlu0 %40
    %44 = vset.pattern.permute.xlu0 0
    %45 = vperm.xlu0 %44, %v35
    %v46 = vpop.permute.xlu0 %45
    %49 = vset.pattern.permute.xlu0 0
    %50 = vperm.xlu0 %49, %v36
    %v51 = vpop.permute.xlu0 %50
    %54 = vset.pattern.permute.xlu0 0
    %55 = vperm.xlu0 %54, %v37
    %v56 = vpop.permute.xlu0 %55
    %v62 = vunpack.c.l.b16 %v28
    %v63 = vunpack.c.l.b16 %v29
    %v64 = vunpack.c.l.b16 %v30
    %v65 = vunpack.c.l.b16 %v31
    %v66 = vpack.c.b16 %v63, %v62
    %v67 = vpack.c.b16 %v65, %v64
    %v70 = vunpack.c.l.b16 %v32
    %v71 = vunpack.c.h.b16 %v32
    %v72 = vunpack.c.l.b16 %v33
    %v73 = vunpack.c.h.b16 %v33
    %v74 = vpack.c.b16 %v72, %v70
    %v75 = vpack.c.b16 %v73, %v71
    %vm78 = vcmask 130048
    %v80 = vsel %vm78, %v66, 0
    %v83 = vsel %vm78, %v67, 0
    %85 = vmatpush.bf16.msra.mxu0 0
    %86 = vmatpush.bf16.msra.mxu0 0
    %87 = vmatpush.bf16.msra.mxu0 0
    %88 = vmatpush.bf16.msra.mxu0 0
    %89 = vmatpush.bf16.msra.mxu0 0
    %90 = vmatpush.bf16.msra.mxu0 0
    %91 = vmatpush.bf16.msra.mxu0 0
    %92 = vmatpush.bf16.msra.mxu0 %v74
    %93 = vmatmul.bf16.gmra.mxu0 %v80
    %v94 = vpop.f32.mrf.mxu0
    %v95 = vadd.f32 %v41, %v94
    %v96 = vpop.f32.mrf.mxu0
    %v97 = vadd.f32 %v46, %v96
    %98 = vmatmul.bf16.gmra.mxu0 %v83
    %v99 = vpop.f32.mrf.mxu0
    %v100 = vadd.f32 %v51, %v99
    %v101 = vpop.f32.mrf.mxu0
    %v102 = vadd.f32 %v56, %v101
    %103 = vdwg.mxu0
    %104 = vmatpush.bf16.msra.mxu0 0
    %105 = vmatpush.bf16.msra.mxu0 0
    %106 = vmatpush.bf16.msra.mxu0 0
    %107 = vmatpush.bf16.msra.mxu0 0
    %108 = vmatpush.bf16.msra.mxu0 0
    %109 = vmatpush.bf16.msra.mxu0 0
    %110 = vmatpush.bf16.msra.mxu0 0
    %111 = vmatpush.bf16.msra.mxu0 %v75
    %112 = vmatmul.bf16.gmra.mxu0 %v80
    %v113 = vpop.f32.mrf.mxu0
    %v114 = vadd.f32 %v41, %v113
    %v115 = vpop.f32.mrf.mxu0
    %v116 = vadd.f32 %v46, %v115
    %117 = vmatmul.bf16.gmra.mxu0 %v83
    %v118 = vpop.f32.mrf.mxu0
    %v119 = vadd.f32 %v51, %v118
    %v120 = vpop.f32.mrf.mxu0
    %v121 = vadd.f32 %v56, %v120
    %122 = vdwg.mxu0
    %v123 = vmax.f32 %v95, 0.0
    %v124 = vmax.f32 %v114, 0.0
    %v125 = vmax.f32 %v97, 0.0
    %v126 = vmax.f32 %v116, 0.0
    %v127 = vmax.f32 %v100, 0.0
    %v128 = vmax.f32 %v119, 0.0
    %v129 = vmax.f32 %v102, 0.0
    %v130 = vmax.f32 %v121, 0.0
    %v131 = vld [vmem:[%s3] sm:$0xf]
    %v132 = vld [vmem:[%s3 + $0x4] sm:$0xf]
    %v133 = vld [vmem:[%s3 + $0x8] sm:$0xf]
    %v134 = vld [vmem:[%s3 + $0xc] sm:$0xf]
    %v135 = vpack.c.bf16 %v125, %v123
    %v136 = vpack.c.bf16 %v126, %v124
    %v137 = vpack.c.bf16 %v129, %v127
    %v138 = vpack.c.bf16 %v130, %v128
    %v139 = vld [vmem:[%s4] sm:$0xff]
    %v140 = vld [vmem:[%s4 + $0x8] sm:$0xff]
    %v141 = vld [vmem:[%s4 + $0x10] sm:$0xff]
    %v142 = vld [vmem:[%s4 + $0x18] sm:$0xff]
    %144 = vset.pattern.permute.xlu0 0
    %145 = vperm.xlu0 %144, %v139
    %v146 = vpop.permute.xlu0 %145
    %149 = vset.pattern.permute.xlu0 0
    %150 = vperm.xlu0 %149, %v140
    %v151 = vpop.permute.xlu0 %150
    %154 = vset.pattern.permute.xlu0 0
    %155 = vperm.xlu0 %154, %v141
    %v156 = vpop.permute.xlu0 %155
    %159 = vset.pattern.permute.xlu0 0
    %160 = vperm.xlu0 %159, %v142
    %v161 = vpop.permute.xlu0 %160
    %v167 = vunpack.c.l.b16 %v131
    %v168 = vunpack.c.l.b16 %v132
    %v169 = vunpack.c.l.b16 %v133
    %v170 = vunpack.c.l.b16 %v134
    %v171 = vpack.c.b16 %v168, %v167
    %v172 = vpack.c.b16 %v170, %v169
    %vm173 = vcmask 261120
    %v175 = vsel %vm173, %v171, 0
    %v178 = vsel %vm173, %v172, 0
    %180 = vmatpush.bf16.msra.mxu0 0
    %181 = vmatpush.bf16.msra.mxu0 0
    %182 = vmatpush.bf16.msra.mxu0 0
    %183 = vmatpush.bf16.msra.mxu0 0
    %184 = vmatpush.bf16.msra.mxu0 0
    %185 = vmatpush.bf16.msra.mxu0 0
    %186 = vmatpush.bf16.msra.mxu0 %v137
    %187 = vmatpush.bf16.msra.mxu0 %v135
    %188 = vmatmul.bf16.gmra.mxu0 %v175
    %v189 = vpop.f32.mrf.mxu0
    %v190 = vadd.f32 %v146, %v189
    %v191 = vpop.f32.mrf.mxu0
    %v192 = vadd.f32 %v151, %v191
    %193 = vmatmul.bf16.gmra.mxu0 %v178
    %v194 = vpop.f32.mrf.mxu0
    %v195 = vadd.f32 %v156, %v194
    %v196 = vpop.f32.mrf.mxu0
    %v197 = vadd.f32 %v161, %v196
    %198 = vdwg.mxu0
    %199 = vmatpush.bf16.msra.mxu0 0
    %200 = vmatpush.bf16.msra.mxu0 0
    %201 = vmatpush.bf16.msra.mxu0 0
    %202 = vmatpush.bf16.msra.mxu0 0
    %203 = vmatpush.bf16.msra.mxu0 0
    %204 = vmatpush.bf16.msra.mxu0 0
    %205 = vmatpush.bf16.msra.mxu0 %v138
    %206 = vmatpush.bf16.msra.mxu0 %v136
    %207 = vmatmul.bf16.gmra.mxu0 %v175
    %v208 = vpop.f32.mrf.mxu0
    %v209 = vadd.f32 %v146, %v208
    %v210 = vpop.f32.mrf.mxu0
    %v211 = vadd.f32 %v151, %v210
    %212 = vmatmul.bf16.gmra.mxu0 %v178
    %v213 = vpop.f32.mrf.mxu0
    %v214 = vadd.f32 %v156, %v213
    %v215 = vpop.f32.mrf.mxu0
    %v216 = vadd.f32 %v161, %v215
    %217 = vdwg.mxu0
    %v218 = vmax.f32 %v190, 0.0
    %v219 = vmax.f32 %v209, 0.0
    %v220 = vmax.f32 %v192, 0.0
    %v221 = vmax.f32 %v211, 0.0
    %v222 = vmax.f32 %v195, 0.0
    %v223 = vmax.f32 %v214, 0.0
    %v224 = vmax.f32 %v197, 0.0
    %v225 = vmax.f32 %v216, 0.0
    %v226 = vld [vmem:[%s5] sm:$0xf]
    %v227 = vpack.c.bf16 %v220, %v218
    %v228 = vpack.c.bf16 %v221, %v219
    %v229 = vpack.c.bf16 %v224, %v222
    %v230 = vpack.c.bf16 %v225, %v223
    %v231 = vld [vmem:[%s6] sm:$0xff]
    %233 = vset.pattern.permute.xlu0 0
    %234 = vperm.xlu0 %233, %v231
    %v235 = vpop.permute.xlu0 %234
    %v238 = vsel %vm173, %v226, 0
    %240 = vmatpush.bf16.msra.mxu0 0
    %241 = vmatpush.bf16.msra.mxu0 0
    %242 = vmatpush.bf16.msra.mxu0 0
    %243 = vmatpush.bf16.msra.mxu0 0
    %244 = vmatpush.bf16.msra.mxu0 0
    %245 = vmatpush.bf16.msra.mxu0 0
    %246 = vmatpush.bf16.msra.mxu0 %v229
    %247 = vmatpush.bf16.msra.mxu0 %v227
    %248 = vmatmul.bf16.gmra.mxu0 %v238
    %v249 = vpop.f32.mrf.mxu0
    %v250 = vadd.f32 %v235, %v249
    %v251 = vpop.f32.mrf.mxu0
    %252 = vdwg.mxu0
    %253 = vmatpush.bf16.msra.mxu0 0
    %254 = vmatpush.bf16.msra.mxu0 0
    %255 = vmatpush.bf16.msra.mxu0 0
    %256 = vmatpush.bf16.msra.mxu0 0
    %257 = vmatpush.bf16.msra.mxu0 0
    %258 = vmatpush.bf16.msra.mxu0 0
    %259 = vmatpush.bf16.msra.mxu0 %v230
    %260 = vmatpush.bf16.msra.mxu0 %v228
    %261 = vmatmul.bf16.gmra.mxu0 %v238
    %v262 = vpop.f32.mrf.mxu0
    %v263 = vadd.f32 %v235, %v262
    %v264 = vpop.f32.mrf.mxu0
    %265 = vdwg.mxu0
    %v266 = vrot.slane %v250, 4
    %v267 = vmax.f32 %v250, %v266
    %v268 = vrot.slane %v267, 2
    %v269 = vmax.f32 %v267, %v268
    %v270 = vrot.slane %v269, 1
    %v271 = vmax.f32 %v269, %v270
    %v272 = vrot.slane %v263, 4
    %v273 = vmax.f32 %v263, %v272
    %v274 = vrot.slane %v273, 2
    %v275 = vmax.f32 %v273, %v274
    %v276 = vrot.slane %v275, 1
    %v277 = vmax.f32 %v275, %v276
    %v278 = vsub.f32 %v250, %v271
    %v279 = vsub.f32 %v263, %v277
    %v280 = vmul.f32 %v278, 1.442695
    %v281 = vpow.pop %v280
    %v282 = vmul.f32 %v279, 1.442695
    %v283 = vpow.pop %v282
    %v284 = vrot.slane %v281, 4
    %v285 = vadd.f32 %v281, %v284
    %v286 = vrot.slane %v285, 2
    %v287 = vadd.f32 %v285, %v286
    %v288 = vrot.slane %v287, 1
    %v289 = vadd.f32 %v287, %v288
    %v290 = vrot.slane %v283, 4
    %v291 = vadd.f32 %v283, %v290
    %v292 = vrot.slane %v291, 2
    %v293 = vadd.f32 %v291, %v292
    %v294 = vrot.slane %v293, 1
    %v295 = vadd.f32 %v293, %v294
    %v296 = vrcp.pop %v289
    %v297 = vmul.f32 %v289, %v296
    %v298 = vsub.f32 1.0, %v297
    %v299 = vmul.f32 %v296, %v298
    %v300 = vadd.f32 %v296, %v299
    %vm301 = vweird.f32 %v289
    %vm302 = vweird.f32 %v296
    %vm303 = vmor %vm301, %vm302
    %v304 = vsel %vm303, %v296, %v300
    %v305 = vand.u32 2147483647, %v289
    %vm306 = vcmp.eq.f32.partialorder %v305, 8.507059e+37
    %v307 = vand.u32 %v289, 2147483648
    %v308 = vor.u32 1.1754944e-38, %v307
    %v309 = vsel %vm306, %v308, %v304
    %v310 = vmul.f32 %v281, %v309
    %v311 = vrcp.pop %v295
    %v312 = vmul.f32 %v295, %v311
    %v313 = vsub.f32 1.0, %v312
    %v314 = vmul.f32 %v311, %v313
    %v315 = vadd.f32 %v311, %v314
    %vm316 = vweird.f32 %v295
    %vm317 = vweird.f32 %v311
    %vm318 = vmor %vm316, %vm317
    %v319 = vsel %vm318, %v311, %v315
    %v320 = vand.u32 2147483647, %v295
    %vm321 = vcmp.eq.f32.partialorder %v320, 8.507059e+37
    %v322 = vand.u32 %v295, 2147483648
    %v323 = vor.u32 1.1754944e-38, %v322
    %v324 = vsel %vm321, %v323, %v319
    %v325 = vmul.f32 %v283, %v324
    %v326 = vmul.f32 %v310, 9.9
    %v327 = vmul.f32 %v325, 9.9
    %v328 = vadd.f32 %v326, 0.1
    %v329 = vadd.f32 %v327, 0.1
    %v330 = vlaneseq
    %vm331 = vcmp.ge.s32.totalorder %v330, 0
    %vm332 = vcmp.lt.s32.totalorder %v330, 256
    %vm333 = vmand %vm331, %vm332
    %334 = vst.msk [vmem:[#allocation2] ss:$8 sm:$0x3] %vm333, 10.0
    %335 = vst.msk [vmem:[#allocation2] ss:$8 sm:$0x0] %vm333, 10.0
    %v338 = vrot.slane %v328, 7
    %v339 = vrot.slane %v329, 7
    %342 = vst [vmem:[#allocation2] sm:$0xfe] %v338
    %343 = vst [vmem:[#allocation2 + $0x8] sm:$0xfe] %v339
    %344 = vst [vmem:[#allocation2 + $0x10] sm:$0x1] %v338
    %345 = vst [vmem:[#allocation2 + $0x18] sm:$0x1] %v339
    %s346 = scalar_lea.vmem [#allocation2], 17
    %347 = vst.msk [vmem:[%s346] ss:$8 sm:$0x3] %vm333, 0.1
    %348 = vst.msk [vmem:[%s346] ss:$8 sm:$0x0] %vm333, 0.1
    // Predicated region
    $region30: #{tpu_custom_call.1} parent=1 // pred_check
      _
    $region31: #{tpu_custom_call.1} parent=1 // pred_check_branch
      %350 = sbr.rel (0) target = $region33
    $region32: #{tpu_custom_call.1} parent=1 // pred_region
      %352 = vsyncadd [#allocation3], 0
      %s353 = sshll.u32 [#allocation2], 4
      %s354 = int_to_ptr.vmem [resolvable:$true] %s353
      %s355 = sshll.u32 %s7, 4
      %s356 = int_to_ptr.hbm [resolvable:$true] %s355
      %361 = dma.vmem_to_hbm [thread:$0]  %s354, 512, %s356, [#allocation3], 256, 256, 16
    $region33: #{tpu_custom_call.1} parent=1 // pred_fallthru
      _
    // Predicated region
    $region34: #{tpu_custom_call.1} parent=1 // pred_check
      _
    $region35: #{tpu_custom_call.1} parent=1 // pred_check_branch
      %363 = sbr.rel (0) target = $region37
    $region36: #{tpu_custom_call.1} parent=1 // pred_region
      %365 = dma.done [#allocation3], 512
    $region37: #{tpu_custom_call.1} parent=1 // pred_fallthru
      _
    %366 = vsyncpa [#allocation3], 1

</llo_original>
